<compile_context>
chip_gen: v5e
topology: v5e:2x2
jax: 0.10.0
libtpu: 0.0.40
codegen_flags: <defaults>
</compile_context>

<pallas_src>
import functools
import math

import jax
import jax.numpy as jnp
import numpy as np
from jax.experimental import pallas as pl
from jax.experimental.pallas import tpu as pltpu

_LANE = 128


def _round_up(x, m):
    return ((x + m - 1) // m) * m


def _pick_channel_tile(C):
    # Lane-aligned channel tiles when possible; otherwise keep C whole
    # (full-extent dims are exempt from the (8,128) divisibility rule).
    if C % _LANE == 0:
        t = 256 if C % 256 == 0 else _LANE
        return min(t, C)
    return C


def _pick_hw_tile(HW, per_lane_bytes, budget_bytes, max_lanes):
    # Largest multiple-of-128 spatial tile that fits the VMEM budget for one
    # streamed block; HW <= 128 uses the full extent (single block).
    if HW <= _LANE:
        return HW
    t = (budget_bytes // max(per_lane_bytes, 1)) // _LANE * _LANE
    return int(max(_LANE, min(t, max_lanes, _round_up(HW, _LANE))))


# ---------------------------------------------------------------------------
# Pass 1: per-channel spatial sum (f32 accumulation, ragged tail masked)
# ---------------------------------------------------------------------------
def _pool_sum_kernel(x_ref, sum_ref, *, hw, ragged):
    # x_ref:   (N, tile_c, tile_hw)  current input block
    # sum_ref: (N, tile_c) f32       resident accumulator for this channel tile
    j = pl.program_id(1)

    @pl.when(j == 0)
    def _init():
        sum_ref[...] = jnp.zeros_like(sum_ref)

    xb = x_ref[...]
    if ragged:
        # Mask the out-of-bounds lanes of the overhanging edge block (cheap VPU
        # select; garbage in the padded region never enters the sum).
        lane = jax.lax.broadcasted_iota(jnp.int32, xb.shape, 2)
        remaining = hw - j * xb.shape[-1]
        xb = jnp.where(lane < remaining, xb, jnp.zeros_like(xb))

    sum_ref[...] += jnp.sum(xb.astype(jnp.float32), axis=-1)


# ---------------------------------------------------------------------------
# Pass 2: broadcast the per-channel gate over every spatial position
# ---------------------------------------------------------------------------
def _broadcast_gate_kernel(gate_ref, o_ref):
    # gate_ref: (N, tile_c, 1) in out dtype (tiny, resident); o_ref: (N, tile_c, tile_hw)
    o_ref[...] = jnp.broadcast_to(gate_ref[...], o_ref.shape)


# ---------------------------------------------------------------------------
# Wrapper
# ---------------------------------------------------------------------------
@jax.jit
def linear_eca_block(x, w5):
    """Pallas TPU forward of Linear_Eca_block.

    x: (N, C, H, W); w5: (5,) Conv1d(1, 1, 5, padding=2, bias=False) weights.
    Returns sigmoid(conv1d(avgpool(x))) broadcast to x.shape, dtype of x.
    """
    N, C, H, W = x.shape
    HW = H * W
    itemsize = jnp.dtype(x.dtype).itemsize

    tile_c = _pick_channel_tile(C)
    c_tiles = C // tile_c

    x3 = x.reshape(N, C, HW)                       # contiguous, free reshape
    w5f = w5.reshape(5).astype(jnp.float32)

    # -------- pass 1: per-channel spatial sum --------
    tile_hw1 = _pick_hw_tile(HW, N * tile_c * itemsize, 4 * 1024 * 1024, 1024)
    hw_tiles1 = pl.cdiv(HW, tile_hw1)
    ragged1 = (HW % tile_hw1) != 0

    pooled = pl.pallas_call(
        functools.partial(_pool_sum_kernel, hw=HW, ragged=ragged1),
        out_shape=jax.ShapeDtypeStruct((N, C), jnp.float32),
        grid=(c_tiles, hw_tiles1),
        in_specs=[pl.BlockSpec((N, tile_c, tile_hw1), lambda c, j: (0, c, j))],
        out_specs=pl.BlockSpec((N, tile_c), lambda c, j: (0, c)),
        compiler_params=pltpu.CompilerParams(
            # channel tiles are independent -> parallel (megacore);
            # spatial reduction axis stays last and sequential.
            dimension_semantics=("parallel", "arbitrary"),
            vmem_limit_bytes=32 * 1024 * 1024,
        ),
        cost_estimate=pl.CostEstimate(
            flops=N * C * HW, transcendentals=0,
            bytes_accessed=N * C * HW * itemsize + N * C * 4,
        ),
    )(x3)

    # -------- tiny gate math in plain jnp: mean, conv1d(k=5, pad=2), sigmoid --------
    y = pooled * jnp.float32(1.0 / HW)                         # (N, C)
    yp = jnp.pad(y, ((0, 0), (2, 2)))                          # zero padding
    z = sum(w5f[k] * yp[:, k:k + C] for k in range(5))         # (N, C)
    gate = jax.nn.sigmoid(z).astype(x.dtype).reshape(N, C, 1)

    # -------- pass 2: broadcast the gate (write-bandwidth bound) --------
    tile_hw2 = _pick_hw_tile(HW, N * tile_c * itemsize, 8 * 1024 * 1024, 2048)
    hw_tiles2 = pl.cdiv(HW, tile_hw2)

    out3 = pl.pallas_call(
        _broadcast_gate_kernel,
        out_shape=jax.ShapeDtypeStruct((N, C, HW), x.dtype),
        grid=(c_tiles, hw_tiles2),
        in_specs=[pl.BlockSpec((N, tile_c, 1), lambda c, j: (0, c, 0))],
        out_specs=pl.BlockSpec((N, tile_c, tile_hw2), lambda c, j: (0, c, j)),
        compiler_params=pltpu.CompilerParams(
            dimension_semantics=("parallel", "parallel"),
            vmem_limit_bytes=32 * 1024 * 1024,
        ),
        cost_estimate=pl.CostEstimate(
            flops=0, transcendentals=0,
            bytes_accessed=N * C * itemsize + N * C * HW * itemsize,
        ),
    )(gate)

    return out3.reshape(N, C, H, W)


def _reference(x, w5):
    # Pure-JAX reference of the PyTorch forward.
    y = jnp.mean(x.astype(jnp.float32), axis=(2, 3))           # (N, C)
    C = x.shape[1]
    yp = jnp.pad(y, ((0, 0), (2, 2)))                          # (N, C+4)
    z = sum(w5.astype(jnp.float32)[k] * yp[:, k:k + C] for k in range(5))
    s = jax.nn.sigmoid(z).astype(x.dtype)
    return jnp.broadcast_to(s[:, :, None, None], x.shape)


if __name__ == "__main__":
    key = jax.random.PRNGKey(0)
    kx, kw = jax.random.split(key)

    # Deterministic Conv1d(1, 1, 5, bias=False) weight init (uniform, fan_in=5).
    bound = 1.0 / math.sqrt(5.0)
    w5 = jax.random.uniform(kw, (5,), minval=-bound, maxval=bound,
                            dtype=jnp.float32)

    shapes = [
        (2, 4, 16, 16),   # spec shape: HW = 256 (lane-aligned)
        (2, 3, 15, 17),   # ragged HW = 255 + unaligned C: mask / overhang path
        (2, 512, 9, 9),   # channel tiling (2 tiles of 256), full-extent HW < 128
    ]
    for i, shp in enumerate(shapes):
        x = jax.random.normal(jax.random.fold_in(kx, i), shp, dtype=jnp.float32)
        out = jax.block_until_ready(linear_eca_block(x, w5))
        ref = jax.block_until_ready(_reference(x, w5))
        assert out.shape == x.shape, f"shape mismatch for {shp}"
        assert np.allclose(np.asarray(out), np.asarray(ref),
                           atol=1e-5, rtol=1e-5), f"value mismatch for {shp}"

    print("KERNEL_OK")
</pallas_src>

<mosaic_0001>
module attributes {stable_mosaic.version = 11 : i64} {
  func.func @_pool_sum_kernel(%arg0: i32, %arg1: i32, %arg2: memref<2x4x256xf32, #tpu.memory_space<vmem>>, %arg3: memref<2x4xf32, #tpu.memory_space<vmem>>) attributes {dimension_semantics = [#tpu.dimension_semantics<parallel>, #tpu.dimension_semantics<arbitrary>], iteration_bounds = array<i64: 1, 1>, scalar_prefetch = 0 : i64, scratch_operands = 0 : i64, tpu.core_type = #tpu.core_type<tc>, window_params = [{transform_indices = @transform_0, window_bounds = array<i64: 2, 4, 256>}, {transform_indices = @transform_1, window_bounds = array<i64: 2, 4>}]} {
    %c0_i32 = arith.constant 0 : i32
    %0 = arith.cmpi eq, %arg1, %c0_i32 : i32
    %1 = arith.extui %0 : i1 to i32
    %c0_i32_0 = arith.constant 0 : i32
    %2 = arith.cmpi ne, %1, %c0_i32_0 : i32
    scf.if %2 {
      %cst_7 = arith.constant 0.000000e+00 : f32
      %8 = vector.broadcast %cst_7 : f32 to vector<2x4xf32>
      %c0_8 = arith.constant 0 : index
      %c0_9 = arith.constant 0 : index
      %9 = vector.load %arg3[%c0_8, %c0_9] : memref<2x4xf32, #tpu.memory_space<vmem>>, vector<2x4xf32>
      tpu.vector_store %arg3[%c0_8, %c0_9], %8 {strides = array<i32>} : memref<2x4xf32, #tpu.memory_space<vmem>>, vector<2x4xf32>,
    } else {
    }
    %c0 = arith.constant 0 : index
    %c0_1 = arith.constant 0 : index
    %c0_2 = arith.constant 0 : index
    %3 = vector.load %arg2[%c0, %c0_1, %c0_2] : memref<2x4x256xf32, #tpu.memory_space<vmem>>, vector<2x4x256xf32>
    %c0_3 = arith.constant 0 : index
    %c0_4 = arith.constant 0 : index
    %4 = vector.load %arg3[%c0_3, %c0_4] : memref<2x4xf32, #tpu.memory_space<vmem>>, vector<2x4xf32>
    %cst = arith.constant dense<0.000000e+00> : vector<2x4xf32>
    %5 = vector.multi_reduction <add>, %3, %cst [2] : vector<2x4x256xf32> to vector<2x4xf32>
    %6 = arith.addf %4, %5 : vector<2x4xf32>
    %c0_5 = arith.constant 0 : index
    %c0_6 = arith.constant 0 : index
    %7 = vector.load %arg3[%c0_5, %c0_6] : memref<2x4xf32, #tpu.memory_space<vmem>>, vector<2x4xf32>
    tpu.vector_store %arg3[%c0_5, %c0_6], %6 {strides = array<i32>} : memref<2x4xf32, #tpu.memory_space<vmem>>, vector<2x4xf32>,
    return
  }
  func.func @transform_0(%arg0: i32, %arg1: i32) -> (i32, i32, i32) {
    %c0_i32 = arith.constant 0 : i32
    %c0_i32_0 = arith.constant 0 : i32
    return %c0_i32, %arg0, %arg1 : i32, i32, i32
  }
  func.func @transform_1(%arg0: i32, %arg1: i32) -> (i32, i32) {
    %c0_i32 = arith.constant 0 : i32
    %c0_i32_0 = arith.constant 0 : i32
    return %c0_i32, %arg0 : i32, i32
  }
}

module attributes {stable_mosaic.version = 11 : i64} {
  func.func @_broadcast_gate_kernel(%arg0: i32, %arg1: i32, %arg2: memref<2x4x1xf32, #tpu.memory_space<vmem>>, %arg3: memref<2x4x256xf32, #tpu.memory_space<vmem>>) attributes {dimension_semantics = [#tpu.dimension_semantics<parallel>, #tpu.dimension_semantics<parallel>], iteration_bounds = array<i64: 1, 1>, scalar_prefetch = 0 : i64, scratch_operands = 0 : i64, tpu.core_type = #tpu.core_type<tc>, window_params = [{transform_indices = @transform_0, window_bounds = array<i64: 2, 4, 1>}, {transform_indices = @transform_1, window_bounds = array<i64: 2, 4, 256>}]} {
    %c0 = arith.constant 0 : index
    %c0_0 = arith.constant 0 : index
    %c0_1 = arith.constant 0 : index
    %0 = vector.load %arg2[%c0, %c0_0, %c0_1] : memref<2x4x1xf32, #tpu.memory_space<vmem>>, vector<2x4x1xf32>
    %1 = vector.shape_cast %0 : vector<2x4x1xf32> to vector<2x4x1xf32>
    %2 = vector.broadcast %1 : vector<2x4x1xf32> to vector<2x4x256xf32>
    %c0_2 = arith.constant 0 : index
    %c0_3 = arith.constant 0 : index
    %c0_4 = arith.constant 0 : index
    %3 = vector.load %arg3[%c0_2, %c0_3, %c0_4] : memref<2x4x256xf32, #tpu.memory_space<vmem>>, vector<2x4x256xf32>
    tpu.vector_store %arg3[%c0_2, %c0_3, %c0_4], %2 {strides = array<i32>} : memref<2x4x256xf32, #tpu.memory_space<vmem>>, vector<2x4x256xf32>,
    return
  }
  func.func @transform_0(%arg0: i32, %arg1: i32) -> (i32, i32, i32) {
    %c0_i32 = arith.constant 0 : i32
    %c0_i32_0 = arith.constant 0 : i32
    %c0_i32_1 = arith.constant 0 : i32
    return %c0_i32, %arg0, %c0_i32_0 : i32, i32, i32
  }
  func.func @transform_1(%arg0: i32, %arg1: i32) -> (i32, i32, i32) {
    %c0_i32 = arith.constant 0 : i32
    %c0_i32_0 = arith.constant 0 : i32
    return %c0_i32, %arg0, %arg1 : i32, i32, i32
  }
}

</mosaic_0001>

<llo_original>
// kernel: linear_eca_block.2
$region0: #{linear_eca_block.2}
  #allocation0 [shape = 'u32[]', space=smem, size = 0x4, offset = 0x4, fixed_abs, tag = 'smem constant byte address 0x4 - core index']
  #allocation1 [shape = 'u32[72,128]{1,0:T(1,128)}', space=vmem, size = 0x9000, scoped, tag = 'internal scratch']
  %s0 = inlined_call_operand.vmem [shape: f32[2,4,256], index: 0, kind: input, shape index: {}]
  %s1 = inlined_call_operand.vmem [shape: f32[2,4], index: 1, kind: output, shape index: {}]
  %s2 = sld [smem:[#allocation0]]
  $region18: #{linear_eca_block.2} parent=0
    _
  %s4 = ssub.s32 1, %s2
  %s5 = scalar_select 0, %s4, %s2
  // Predicated region
  $region2: #{linear_eca_block.2} parent=0 // pred_check
    _
  $region3: #{linear_eca_block.2} parent=0 // pred_check_branch
    %7 = sbr.rel (0) target = $region5
  $region4: #{linear_eca_block.2} parent=0 // pred_region
    _
  $region5: #{linear_eca_block.2} parent=0 // pred_fallthru
    _
  %p8 = scmp.eq.s32.totalorder 0, 0
  // Predicated region
  $region6: #{linear_eca_block.2} parent=0 // pred_check
    %p9 = pneg %p8
  $region7: #{linear_eca_block.2} parent=0 // pred_check_branch
    %11 = sbr.rel (%p9) target = $region9
  $region8: #{linear_eca_block.2} parent=0 // pred_region
    %vm12 = vcmask 25600
    %13 = vst.msk [vmem:[%s1] sm:$0x3] %vm12, 0.0
  $region9: #{linear_eca_block.2} parent=0 // pred_fallthru
    _
  %v14 = vld [vmem:[%s0] sm:$0xff]
  %v15 = vld [vmem:[%s0 + $0x8] sm:$0xff]
  %v16 = vld [vmem:[%s1] sm:$0x3]
  %19 = vst [vmem:[#allocation1] ss:$2 sm:$0xff] %v14
  %v20 = vld.sshfl [vmem:[#allocation1] sm:$0xff pattern:$0x75316420]
  %v21 = vld.sshfl [vmem:[#allocation1 + $0x8] sm:$0xff pattern:$0x75316420]
  %s22 = scalar_lea.vmem [#allocation1], 16
  %23 = vst [vmem:[%s22] ss:$2 sm:$0xff] %v15
  %v24 = vld.sshfl [vmem:[#allocation1 + $0x10] sm:$0xff pattern:$0x75316420]
  %v25 = vld.sshfl [vmem:[#allocation1 + $0x18] sm:$0xff pattern:$0x75316420]
  %vm30 = vcmask 1043456
  %v31 = vsel %vm30, %v20, 0.0
  %v32 = vsel %vm30, %v21, 0.0
  %v33 = vadd.f32 %v31, %v32
  %34 = vadd.xlane.f32.xlu0 %v33
  %v35 = vpop.xlane.xlu0 %34
  %v36 = vsel %vm30, %v24, 0.0
  %v37 = vsel %vm30, %v25, 0.0
  %v38 = vadd.f32 %v36, %v37
  %39 = vadd.xlane.f32.xlu0 %v38
  %v40 = vpop.xlane.xlu0 %39
  %v43 = vlaneseq
  %v44 = vand.u32 %v43, 127
  %v45 = vperm.slane %v35, %v44
  %v46 = vperm.slane %v40, %v44
  %vm47 = vcmask 1041409
  %v48 = vsel %vm47, %v46, %v45
  %v50 = vadd.f32 %v16, %v48
  %vm51 = vcmask 25600
  %52 = vst.msk [vmem:[%s1] sm:$0x3] %vm51, %v50
  // Predicated region
  $region10: #{linear_eca_block.2} parent=0 // pred_check
    _
  $region11: #{linear_eca_block.2} parent=0 // pred_check_branch
    %54 = sbr.rel (0) target = $region13
  $region12: #{linear_eca_block.2} parent=0 // pred_region
    _
  $region13: #{linear_eca_block.2} parent=0 // pred_fallthru
    _
  // Predicated region
  $region14: #{linear_eca_block.2} parent=0 // pred_check
    _
  $region15: #{linear_eca_block.2} parent=0 // pred_check_branch
    %56 = sbr.rel (0) target = $region17
  $region16: #{linear_eca_block.2} parent=0 // pred_region
    _
  $region17: #{linear_eca_block.2} parent=0 // pred_fallthru
    _

// kernel: linear_eca_block.3
$region0: #{linear_eca_block.3}
  #allocation0 [shape = 'u32[]', space=smem, size = 0x4, offset = 0x4, fixed_abs, tag = 'smem constant byte address 0x4 - core index']
  #allocation1 [shape = 'u32[72,128]{1,0:T(1,128)}', space=vmem, size = 0x9000, scoped, tag = 'internal scratch']
  %s0 = inlined_call_operand.vmem [shape: f32[2,4,1], index: 0, kind: input, shape index: {}]
  %s1 = inlined_call_operand.vmem [shape: f32[2,4,256], index: 1, kind: output, shape index: {}]
  %s2 = sld [smem:[#allocation0]]
  $region14: #{linear_eca_block.3} parent=0
    _
  %s4 = ssub.s32 1, %s2
  %s5 = scalar_select 0, %s4, %s2
  // Predicated region
  $region2: #{linear_eca_block.3} parent=0 // pred_check
    _
  $region3: #{linear_eca_block.3} parent=0 // pred_check_branch
    %7 = sbr.rel (0) target = $region5
  $region4: #{linear_eca_block.3} parent=0 // pred_region
    _
  $region5: #{linear_eca_block.3} parent=0 // pred_fallthru
    _
  %v8 = vld [vmem:[%s0] sm:$0xf]
  %v9 = vld [vmem:[%s0 + $0x4] sm:$0xf]
  %11 = vset.pattern.permute.xlu0 0
  %12 = vperm.xlu0 %11, %v8
  %v13 = vpop.permute.xlu0 %12
  %15 = vset.pattern.permute.xlu0 0
  %16 = vperm.xlu0 %15, %v9
  %v17 = vpop.permute.xlu0 %16
  %v19 = vunpack.c.l.s4 839922192
  %v20 = vunpack.c.0.s8 %v19
  %v21 = vperm.slane %v13, %v20
  %v23 = vunpack.c.l.s4 839922192
  %v24 = vunpack.c.0.s8 %v23
  %v25 = vperm.slane %v17, %v24
  %28 = vst [vmem:[%s1] sm:$0xff] %v21
  %29 = vst [vmem:[%s1 + $0x8] sm:$0xff] %v25
  // Predicated region
  $region6: #{linear_eca_block.3} parent=0 // pred_check
    _
  $region7: #{linear_eca_block.3} parent=0 // pred_check_branch
    %31 = sbr.rel (0) target = $region9
  $region8: #{linear_eca_block.3} parent=0 // pred_region
    _
  $region9: #{linear_eca_block.3} parent=0 // pred_fallthru
    _
  // Predicated region
  $region10: #{linear_eca_block.3} parent=0 // pred_check
    _
  $region11: #{linear_eca_block.3} parent=0 // pred_check_branch
    %33 = sbr.rel (0) target = $region13
  $region12: #{linear_eca_block.3} parent=0 // pred_region
    _
  $region13: #{linear_eca_block.3} parent=0 // pred_fallthru
    _

</llo_original>
